<compile_context>
chip_gen: v7x
topology: tpu7x:2x2x1
jax: 0.10.0
libtpu: 0.0.40
codegen_flags: <defaults>
</compile_context>

<pallas_src>
import functools

import jax
import jax.numpy as jnp
from jax.experimental import pallas as pl
from jax.experimental.pallas import tpu as pltpu

_MIB = 1024 * 1024


def _round_up(x, m):
    return ((x + m - 1) // m) * m


def _layernorm_f32(x_f32, gamma_f32, beta_f32, eps):
    mean = jnp.mean(x_f32, axis=-1, keepdims=True)
    xc = x_f32 - mean
    var = jnp.mean(xc * xc, axis=-1, keepdims=True)
    return xc * jax.lax.rsqrt(var + eps) * gamma_f32 + beta_f32


def _silu_cast(h_f32, compute_dtype):
    # bf16 weights => bf16 sigmoid*mul (v6e/v7x bf16 EUP/VPU), else f32 math.
    if jnp.dtype(compute_dtype) == jnp.dtype(jnp.bfloat16):
        h = h_f32.astype(jnp.bfloat16)
        return h * jax.nn.sigmoid(h)
    h = h_f32 * jax.nn.sigmoid(h_f32)
    return h.astype(compute_dtype)


def _nffn_kernel_resident(x_ref, g_ref, beta_ref, w1_ref, b1_ref, w2_ref,
                          o_ref, *, eps):
    """Single-panel variant: full weights resident in VMEM, no accumulator."""
    x = x_ref[...].astype(jnp.float32)
    xn = _layernorm_f32(x, g_ref[...].astype(jnp.float32),
                        beta_ref[...].astype(jnp.float32), eps)
    cd = w1_ref.dtype
    h = jnp.dot(xn.astype(cd), w1_ref[...], preferred_element_type=jnp.float32)
    h = h + b1_ref[...].astype(jnp.float32)
    h = _silu_cast(h, cd)
    y = jnp.dot(h, w2_ref[...], preferred_element_type=jnp.float32)
    o_ref[...] = (y + x).astype(o_ref.dtype)


def _nffn_kernel_panels(x_ref, g_ref, beta_ref, w1_ref, b1_ref, w2_ref,
                        o_ref, xn_ref, acc_ref, *, eps):
    """Hidden dim streamed in panels over the trailing (reduction) grid axis."""
    k = pl.program_id(1)
    k_last = pl.num_programs(1) - 1

    @pl.when(k == 0)
    def _init():
        x = x_ref[...].astype(jnp.float32)
        xn = _layernorm_f32(x, g_ref[...].astype(jnp.float32),
                            beta_ref[...].astype(jnp.float32), eps)
        xn_ref[...] = xn.astype(xn_ref.dtype)
        acc_ref[...] = jnp.zeros_like(acc_ref)

    h = jnp.dot(xn_ref[...], w1_ref[...], preferred_element_type=jnp.float32)
    h = h + b1_ref[...].astype(jnp.float32)
    h = _silu_cast(h, w2_ref.dtype)
    acc_ref[...] += jnp.dot(h, w2_ref[...], preferred_element_type=jnp.float32)

    @pl.when(k == k_last)
    def _finalize():
        o_ref[...] = (acc_ref[...] + x_ref[...].astype(jnp.float32)).astype(o_ref.dtype)


def prepare_params(gamma, beta, w1, b1, w2, *, compute_dtype=None):
    """One-time param prep: pre-transpose weights, optional cast.

    w1: (H, D) fc1 weight (PyTorch layout), b1: (H,), w2: (D, H) fc2 weight.
    Returns (gamma (1,D) f32, beta (1,D) f32, W1^T (D,H), b1 (1,H) f32, W2^T (H,D)).
    """
    hdim, d = w1.shape
    if compute_dtype is None:
        compute_dtype = w1.dtype
    w1_t = jnp.asarray(w1.T, dtype=compute_dtype)          # (D, H)
    w2_t = jnp.asarray(w2.T, dtype=compute_dtype)          # (H, D)
    b1_r = jnp.asarray(b1, dtype=jnp.float32).reshape(1, hdim)
    gamma_r = jnp.asarray(gamma, dtype=jnp.float32).reshape(1, d)
    beta_r = jnp.asarray(beta, dtype=jnp.float32).reshape(1, d)
    return gamma_r, beta_r, w1_t, b1_r, w2_t


def _vmem_capacity_and_budget():
    cap = 128 * _MIB
    try:
        info = pltpu.get_tpu_info()
        c = int(getattr(info, "vmem_capacity_bytes", 0))
        if c > 0:
            cap = c
    except Exception:
        pass
    # Leave Mosaic headroom (internal scratch, semaphores, pipeline buffers):
    # ~112 MiB usable on 128 MiB parts (v5e/v6e), ~48 MiB on 64 MiB (v7x).
    budget = max(32 * _MIB, cap - 16 * _MIB)
    return cap, budget


def nffn_forward(x, params, *, eps=1e-5, block_rows=None, block_hidden=None):
    """x: (seq, batch, embed).  params: output of prepare_params."""
    gamma_r, beta_r, w1_t, b1_r, w2_t = params
    seq, batch, d = x.shape
    d_w, hidden = w1_t.shape
    assert d_w == d, "weight / activation embed dim mismatch"

    m = seq * batch
    x2 = x.reshape(m, d)                       # free reshape, no HBM pass

    compute_dtype = w1_t.dtype
    w_item = jnp.dtype(compute_dtype).itemsize
    x_item = jnp.dtype(x.dtype).itemsize

    cap, budget = _vmem_capacity_and_budget()

    # ---- Row tile (parallel axis) -------------------------------------
    if block_rows is None:
        block_rows = 512 if cap > 96 * _MIB else 256
    tm = min(block_rows, _round_up(m, 8))
    # Ensure >=2 steps on the parallel axis so megacore (v7x) can shard rows.
    if m > 8 and pl.cdiv(m, tm) < 2:
        tm = _round_up(pl.cdiv(m, 2), 8)
    n_row = pl.cdiv(m, tm)

    # ---- VMEM footprint estimate (double-buffered blocks + scratch) ----
    def est_bytes(tm_, th_, panels):
        b = 2 * tm_ * d * x_item                       # x tile
        b += 2 * tm_ * d * x_item                      # out tile
        b += 2 * (d * th_ + th_ * d) * w_item          # weight panels
        b += 2 * 8 * th_ * 4 + 2 * 2 * 8 * d * 4       # b1 / gamma / beta
        b += 2 * tm_ * th_ * 4                         # fc1 f32 intermediate + cast
        if panels > 1:
            b += tm_ * d * w_item                      # cached LayerNorm(x)
            b += tm_ * d * 4                           # f32 accumulator
        return b

    # ---- Hidden panel width --------------------------------------------
    def pick_th():
        if block_hidden is not None:
            c = min(block_hidden, hidden)
            if c == hidden or (hidden % c == 0 and c % 128 == 0):
                return c
            return hidden
        if est_bytes(tm, hidden, 1) <= budget:
            return hidden                              # full weights resident
        # 256-aligned panels first (v6e/v7x 256x256 MXU), 128 fallback.
        for cand in (2048, 1024, 512, 256, 128):
            if cand < hidden and hidden % cand == 0 and est_bytes(tm, cand, 2) <= budget:
                return cand
        return hidden

    th = pick_th()
    n_panels = hidden // th
    single = n_panels == 1

    vmem_limit = min(budget, max(32 * _MIB, int(1.5 * est_bytes(tm, th, n_panels))))

    # Advisory cost estimate, consistent with the chosen streaming scheme.
    weight_bytes = 2 * d * hidden * w_item
    if not single:
        weight_bytes *= n_row                          # re-streamed per row tile
    cost = pl.CostEstimate(
        flops=4 * m * d * hidden,
        transcendentals=m * hidden,
        bytes_accessed=2 * m * d * x_item + weight_bytes + hidden * 4 + 2 * d * 4,
    )

    if single:
        grid = (n_row,)
        in_specs = [
            pl.BlockSpec((tm, d), lambda i: (i, 0)),          # x rows
            pl.BlockSpec((1, d), lambda i: (0, 0)),           # gamma
            pl.BlockSpec((1, d), lambda i: (0, 0)),           # beta
            pl.BlockSpec((d, hidden), lambda i: (0, 0)),      # W1^T (resident)
            pl.BlockSpec((1, hidden), lambda i: (0, 0)),      # b1
            pl.BlockSpec((hidden, d), lambda i: (0, 0)),      # W2^T (resident)
        ]
        out_specs = pl.BlockSpec((tm, d), lambda i: (i, 0))
        scratch_shapes = []
        kernel = functools.partial(_nffn_kernel_resident, eps=eps)
        dims = ("parallel",)
    else:
        grid = (n_row, n_panels)
        in_specs = [
            pl.BlockSpec((tm, d), lambda i, k: (i, 0)),       # x rows (resident over k)
            pl.BlockSpec((1, d), lambda i, k: (0, 0)),        # gamma
            pl.BlockSpec((1, d), lambda i, k: (0, 0)),        # beta
            pl.BlockSpec((d, th), lambda i, k: (0, k)),       # W1^T panel
            pl.BlockSpec((1, th), lambda i, k: (0, k)),       # b1 panel
            pl.BlockSpec((th, d), lambda i, k: (k, 0)),       # W2^T panel
        ]
        out_specs = pl.BlockSpec((tm, d), lambda i, k: (i, 0))
        scratch_shapes = [
            pltpu.VMEM((tm, d), compute_dtype),               # cached LayerNorm(x)
            pltpu.VMEM((tm, d), jnp.float32),                 # fc2 accumulator
        ]
        kernel = functools.partial(_nffn_kernel_panels, eps=eps)
        dims = ("parallel", "arbitrary")

    out = pl.pallas_call(
        kernel,
        out_shape=jax.ShapeDtypeStruct((m, d), x.dtype),
        grid_spec=pltpu.PrefetchScalarGridSpec(
            num_scalar_prefetch=0,
            grid=grid,
            in_specs=in_specs,
            out_specs=out_specs,
            scratch_shapes=scratch_shapes,
        ),
        compiler_params=pltpu.CompilerParams(
            dimension_semantics=dims,
            vmem_limit_bytes=vmem_limit,
        ),
        cost_estimate=cost,
    )(x2, gamma_r, beta_r, w1_t, b1_r, w2_t)

    return out.reshape(seq, batch, d)


def nffn_reference(x, gamma, beta, w1, b1, w2, eps=1e-5):
    xf = x.astype(jnp.float32)
    mean = jnp.mean(xf, axis=-1, keepdims=True)
    var = jnp.mean((xf - mean) ** 2, axis=-1, keepdims=True)
    xn = (xf - mean) * jax.lax.rsqrt(var + eps) * gamma + beta
    hdn = xn @ w1.T + b1
    hdn = hdn * jax.nn.sigmoid(hdn)
    y = hdn @ w2.T
    return y + xf


if __name__ == "__main__":
    embed_dim, ffn_hidden_dim = 128, 256
    seq, batch = 8, 2

    key = jax.random.PRNGKey(0)
    kx, k1, k2 = jax.random.split(key, 3)

    x = jax.random.normal(kx, (seq, batch, embed_dim), dtype=jnp.float32)

    # Deterministic params mirroring reset_parameters('bert'):
    #   fc1/fc2 weight ~ N(0, 0.02^2); fc1 bias = 0; LN gamma=1, beta=0.
    std = 0.02
    w1 = std * jax.random.normal(k1, (ffn_hidden_dim, embed_dim), dtype=jnp.float32)
    b1 = jnp.zeros((ffn_hidden_dim,), dtype=jnp.float32)
    w2 = std * jax.random.normal(k2, (embed_dim, ffn_hidden_dim), dtype=jnp.float32)
    gamma = jnp.ones((embed_dim,), dtype=jnp.float32)
    beta = jnp.zeros((embed_dim,), dtype=jnp.float32)

    ref = nffn_reference(x, gamma, beta, w1, b1, w2).astype(jnp.float32)

    params_f32 = prepare_params(gamma, beta, w1, b1, w2, compute_dtype=jnp.float32)

    # 1) f32, auto tiling -> resident single-panel path.
    out = jax.block_until_ready(nffn_forward(x, params_f32))
    assert out.shape == x.shape and out.dtype == x.dtype
    assert jnp.allclose(out, ref, atol=1e-3, rtol=1e-3), "f32 resident mismatch"

    # 2) f32, forced hidden panelling -> exercises the reduction axis.
    out_p = jax.block_until_ready(nffn_forward(x, params_f32, block_hidden=128))
    assert jnp.allclose(out_p, ref, atol=1e-3, rtol=1e-3), "f32 panelled mismatch"

    # 3) bf16 weights (f32 activations, f32 accumulation, bf16 SiLU).
    params_bf16 = prepare_params(gamma, beta, w1, b1, w2, compute_dtype=jnp.bfloat16)
    out_bw = jax.block_until_ready(nffn_forward(x, params_bf16))
    assert out_bw.shape == x.shape
    assert jnp.allclose(out_bw, ref, atol=5e-2, rtol=5e-2), "bf16-weight mismatch"

    # 4) Ragged token count (in-kernel handling, no host pad/slice).
    x3 = jax.random.normal(kx, (7, 3, embed_dim), dtype=jnp.float32)
    out3 = jax.block_until_ready(nffn_forward(x3, params_f32))
    ref3 = nffn_reference(x3, gamma, beta, w1, b1, w2).astype(jnp.float32)
    assert out3.shape == x3.shape
    assert jnp.allclose(out3, ref3, atol=1e-3, rtol=1e-3), "ragged-M mismatch"

    # 5) bf16 activations + bf16 weights (bf16 x/out tiles, f32 math inside).
    x_bf = x.astype(jnp.bfloat16)
    out_bf = jax.block_until_ready(nffn_forward(x_bf, params_bf16))
    ref_bf = nffn_reference(x_bf.astype(jnp.float32), gamma, beta, w1, b1, w2)
    assert out_bf.shape == x.shape and out_bf.dtype == jnp.bfloat16
    assert jnp.allclose(out_bf.astype(jnp.float32), ref_bf, atol=7e-2, rtol=7e-2), \
        "bf16-activation mismatch"

    print("KERNEL_OK")
</pallas_src>

<mosaic_0001>
module attributes {stable_mosaic.version = 11 : i64} {
  func.func @_nffn_kernel_resident(%arg0: i32, %arg1: memref<8x128xf32, #tpu.memory_space<vmem>>, %arg2: memref<1x128xf32, #tpu.memory_space<vmem>>, %arg3: memref<1x128xf32, #tpu.memory_space<vmem>>, %arg4: memref<128x256xf32, #tpu.memory_space<vmem>>, %arg5: memref<1x256xf32, #tpu.memory_space<vmem>>, %arg6: memref<256x128xf32, #tpu.memory_space<vmem>>, %arg7: memref<8x128xf32, #tpu.memory_space<vmem>>) attributes {dimension_semantics = [#tpu.dimension_semantics<parallel>], iteration_bounds = array<i64: 2>, scalar_prefetch = 0 : i64, scratch_operands = 0 : i64, tpu.core_type = #tpu.core_type<tc>, window_params = [{transform_indices = @transform_0, window_bounds = array<i64: 8, 128>}, {pipeline_mode = #tpu.pipeline_mode<synchronous>, transform_indices = @transform_1, window_bounds = array<i64: 1, 128>}, {pipeline_mode = #tpu.pipeline_mode<synchronous>, transform_indices = @transform_2, window_bounds = array<i64: 1, 128>}, {pipeline_mode = #tpu.pipeline_mode<synchronous>, transform_indices = @transform_3, window_bounds = array<i64: 128, 256>}, {pipeline_mode = #tpu.pipeline_mode<synchronous>, transform_indices = @transform_4, window_bounds = array<i64: 1, 256>}, {pipeline_mode = #tpu.pipeline_mode<synchronous>, transform_indices = @transform_5, window_bounds = array<i64: 256, 128>}, {transform_indices = @transform_6, window_bounds = array<i64: 8, 128>}]} {
    %c0 = arith.constant 0 : index
    %c0_0 = arith.constant 0 : index
    %0 = vector.load %arg1[%c0, %c0_0] : memref<8x128xf32, #tpu.memory_space<vmem>>, vector<8x128xf32>
    %c0_1 = arith.constant 0 : index
    %c0_2 = arith.constant 0 : index
    %1 = vector.load %arg2[%c0_1, %c0_2] : memref<1x128xf32, #tpu.memory_space<vmem>>, vector<1x128xf32>
    %c0_3 = arith.constant 0 : index
    %c0_4 = arith.constant 0 : index
    %2 = vector.load %arg3[%c0_3, %c0_4] : memref<1x128xf32, #tpu.memory_space<vmem>>, vector<1x128xf32>
    %cst = arith.constant dense<0.000000e+00> : vector<8xf32>
    %3 = vector.multi_reduction <add>, %0, %cst [1] : vector<8x128xf32> to vector<8xf32>
    %4 = vector.shape_cast %3 : vector<8xf32> to vector<8x1xf32>
    %cst_5 = arith.constant 1.280000e+02 : f32
    %5 = vector.broadcast %cst_5 : f32 to vector<8x1xf32>
    %6 = arith.divf %4, %5 : vector<8x1xf32>
    %7 = vector.broadcast %6 : vector<8x1xf32> to vector<8x128xf32>
    %8 = arith.subf %0, %7 : vector<8x128xf32>
    %9 = arith.mulf %8, %8 : vector<8x128xf32>
    %cst_6 = arith.constant dense<0.000000e+00> : vector<8xf32>
    %10 = vector.multi_reduction <add>, %9, %cst_6 [1] : vector<8x128xf32> to vector<8xf32>
    %11 = vector.shape_cast %10 : vector<8xf32> to vector<8x1xf32>
    %cst_7 = arith.constant 1.280000e+02 : f32
    %12 = vector.broadcast %cst_7 : f32 to vector<8x1xf32>
    %13 = arith.divf %11, %12 : vector<8x1xf32>
    %cst_8 = arith.constant 9.99999974E-6 : f32
    %14 = vector.broadcast %cst_8 : f32 to vector<8x1xf32>
    %15 = arith.addf %13, %14 : vector<8x1xf32>
    %16 = math.rsqrt %15 : vector<8x1xf32>
    %17 = vector.broadcast %16 : vector<8x1xf32> to vector<8x128xf32>
    %18 = arith.mulf %8, %17 : vector<8x128xf32>
    %19 = vector.broadcast %1 : vector<1x128xf32> to vector<8x128xf32>
    %20 = arith.mulf %18, %19 : vector<8x128xf32>
    %21 = vector.broadcast %2 : vector<1x128xf32> to vector<8x128xf32>
    %22 = arith.addf %20, %21 : vector<8x128xf32>
    %c0_9 = arith.constant 0 : index
    %c0_10 = arith.constant 0 : index
    %23 = vector.load %arg4[%c0_9, %c0_10] : memref<128x256xf32, #tpu.memory_space<vmem>>, vector<128x256xf32>
    %cst_11 = arith.constant dense<0.000000e+00> : vector<8x256xf32>
    %24 = tpu.matmul %22, %23, %cst_11 {dimension_numbers = #tpu.dot_dimension_numbers<[1], [0], [0], [1], [0, 0, 1, 1], [], []>} : vector<8x128xf32>, vector<128x256xf32>, vector<8x256xf32> -> vector<8x256xf32>
    %c0_12 = arith.constant 0 : index
    %c0_13 = arith.constant 0 : index
    %25 = vector.load %arg5[%c0_12, %c0_13] : memref<1x256xf32, #tpu.memory_space<vmem>>, vector<1x256xf32>
    %26 = vector.broadcast %25 : vector<1x256xf32> to vector<8x256xf32>
    %27 = arith.addf %24, %26 : vector<8x256xf32>
    %28 = arith.negf %27 : vector<8x256xf32>
    %29 = math.exp %28 : vector<8x256xf32>
    %cst_14 = arith.constant 1.000000e+00 : f32
    %30 = vector.broadcast %cst_14 : f32 to vector<8x256xf32>
    %31 = arith.addf %30, %29 : vector<8x256xf32>
    %32 = arith.divf %30, %31 : vector<8x256xf32>
    %33 = arith.mulf %27, %32 : vector<8x256xf32>
    %c0_15 = arith.constant 0 : index
    %c0_16 = arith.constant 0 : index
    %34 = vector.load %arg6[%c0_15, %c0_16] : memref<256x128xf32, #tpu.memory_space<vmem>>, vector<256x128xf32>
    %cst_17 = arith.constant dense<0.000000e+00> : vector<8x128xf32>
    %35 = tpu.matmul %33, %34, %cst_17 {dimension_numbers = #tpu.dot_dimension_numbers<[1], [0], [0], [1], [0, 0, 1, 1], [], []>} : vector<8x256xf32>, vector<256x128xf32>, vector<8x128xf32> -> vector<8x128xf32>
    %36 = arith.addf %35, %0 : vector<8x128xf32>
    %c0_18 = arith.constant 0 : index
    %c0_19 = arith.constant 0 : index
    %37 = vector.load %arg7[%c0_18, %c0_19] : memref<8x128xf32, #tpu.memory_space<vmem>>, vector<8x128xf32>
    tpu.vector_store %arg7[%c0_18, %c0_19], %36 {strides = array<i32>} : memref<8x128xf32, #tpu.memory_space<vmem>>, vector<8x128xf32>,
    return
  }
  func.func @transform_0(%arg0: i32) -> (i32, i32) {
    %c0_i32 = arith.constant 0 : i32
    %c0_i32_0 = arith.constant 0 : i32
    return %arg0, %c0_i32 : i32, i32
  }
  func.func @transform_1(%arg0: i32) -> (i32, i32) {
    %c0_i32 = arith.constant 0 : i32
    %c0_i32_0 = arith.constant 0 : i32
    %c0_i32_1 = arith.constant 0 : i32
    return %c0_i32, %c0_i32_0 : i32, i32
  }
  func.func @transform_2(%arg0: i32) -> (i32, i32) {
    %c0_i32 = arith.constant 0 : i32
    %c0_i32_0 = arith.constant 0 : i32
    %c0_i32_1 = arith.constant 0 : i32
    return %c0_i32, %c0_i32_0 : i32, i32
  }
  func.func @transform_3(%arg0: i32) -> (i32, i32) {
    %c0_i32 = arith.constant 0 : i32
    %c0_i32_0 = arith.constant 0 : i32
    %c0_i32_1 = arith.constant 0 : i32
    return %c0_i32, %c0_i32_0 : i32, i32
  }
  func.func @transform_4(%arg0: i32) -> (i32, i32) {
    %c0_i32 = arith.constant 0 : i32
    %c0_i32_0 = arith.constant 0 : i32
    %c0_i32_1 = arith.constant 0 : i32
    return %c0_i32, %c0_i32_0 : i32, i32
  }
  func.func @transform_5(%arg0: i32) -> (i32, i32) {
    %c0_i32 = arith.constant 0 : i32
    %c0_i32_0 = arith.constant 0 : i32
    %c0_i32_1 = arith.constant 0 : i32
    return %c0_i32, %c0_i32_0 : i32, i32
  }
  func.func @transform_6(%arg0: i32) -> (i32, i32) {
    %c0_i32 = arith.constant 0 : i32
    %c0_i32_0 = arith.constant 0 : i32
    return %arg0, %c0_i32 : i32, i32
  }
}

</mosaic_0001>

<llo_original>
// kernel: tpu_custom_call.1
$region0: #{tpu_custom_call.1}
  #allocation0 [shape = 'u32[]', space=smem, size = 0x4, offset = 0x4, fixed_abs, tag = 'smem constant byte address 0x4 - core index']
  #allocation1 [shape = 'u32[144,128]{1,0:T(1,128)}', space=vmem, size = 0x12000, scoped, tag = 'internal scratch']
  %s0 = inlined_call_operand.hbm [shape: f32[16,128], index: 0, kind: input, shape index: {}]
  %s1 = inlined_call_operand.vmem [shape: f32[1,128], index: 1, kind: input, shape index: {}]
  %s2 = inlined_call_operand.vmem [shape: f32[1,128], index: 2, kind: input, shape index: {}]
  %s3 = inlined_call_operand.hbm [shape: f32[128,256], index: 3, kind: input, shape index: {}]
  %s4 = inlined_call_operand.vmem [shape: f32[1,256], index: 4, kind: input, shape index: {}]
  %s5 = inlined_call_operand.hbm [shape: f32[256,128], index: 5, kind: input, shape index: {}]
  %s6 = inlined_call_operand.hbm [shape: f32[16,128], index: 6, kind: output, shape index: {}]
  %s7 = sld [smem:[#allocation0]]
  $region69: #{tpu_custom_call.1} parent=0
    _
  %s9 = ssub.s32 1, %s7
  %s10 = scalar_select 0, %s9, %s7
  $region1: #{tpu_custom_call.1} parent=0
    #allocation2 [shape = 'u8[8192]{0}', space=vmem, size = 0x2000, scoped, tag = 'input window, operand 0']
    #allocation3 [shape = 's32[2]{0}', space=sflag, size = 0x8, scoped, tag = 'scoped memory for tpu_custom_call.1']
    #allocation4 [shape = 's32[2]{0}', space=sflag, size = 0x8, scoped, tag = 'scoped memory for tpu_custom_call.1']
    #allocation5 [shape = 'u8[131072]{0}', space=vmem, size = 0x20000, scoped, tag = 'input window, operand 3, single buffered']
    #allocation6 [shape = 's32[1]{0}', space=sflag, size = 0x4, scoped, tag = 'scoped memory for tpu_custom_call.1']
    #allocation7 [shape = 'u8[131072]{0}', space=vmem, size = 0x20000, scoped, tag = 'input window, operand 5, single buffered']
    #allocation8 [shape = 'u8[8192]{0}', space=vmem, size = 0x2000, scoped, tag = 'output window, operand 0']
    %11 = vsyncpa [#allocation3], 0
    %s12 = scalar_lea.sflag [#allocation3], 1
    %13 = vsyncpa %s12, 0
    %14 = vsyncpa [#allocation6], 0
    %15 = vsyncpa [#allocation4], 0
    %s16 = scalar_lea.sflag [#allocation4], 1
    %17 = vsyncpa %s16, 0
    loop: start=0, step=1, limit=4
    $region2: #{tpu_custom_call.1} parent=1 // loop_pre_header
      _
    $region3: #{tpu_custom_call.1} parent=1 // loop_header
      %s19 = sphi 0, %s23
      %p20 = scmp.ge.s32.totalorder %s19, 4
      %s29 = sphi 0, %s31
      %s32 = sphi 0, %s29
      %s33 = sphi 0, %s32
      %s49 = sphi 0, %s33
      %s53 = sphi 0, %s53
      %s55 = sphi 0, %s53
      %s56 = sphi 0, %s55
      %s70 = sphi 0, %s56
      %s74 = sphi 0, %s74
      %s76 = sphi 0, %s74
      %s77 = sphi 0, %s76
      %s91 = sphi 0, %s77
      %s95 = sphi 0, %s95
      %s97 = sphi 0, %s95
      %s98 = sphi 0, %s97
      %s112 = sphi 0, %s98
      %s116 = sphi 0, %s116
      %s118 = sphi 0, %s116
      %s119 = sphi 0, %s118
      %s133 = sphi 0, %s119
      %s137 = sphi 0, %s137
      %s139 = sphi 0, %s137
      %s140 = sphi 0, %s139
      %s154 = sphi 0, %s140
      %s160 = sphi 0, %s162
      %s163 = sphi 0, %s160
      %s164 = sphi 0, %s163
      %s180 = sphi 0, %s164
    $region4: #{tpu_custom_call.1} parent=1 // loop_header_branch
      %22 = sbr.rel (%p20) target = $region8
    $region5: #{tpu_custom_call.1} parent=1 // loop_body
      %s24 = ssub.s32 %s19, 1
      %s25 = ssub.s32 %s19, 2
      %s26 = sadd.s32 %s19, 1
      %s27 = ssub.s32 %s19, %s26
      %p28 = scmp.eq.s32.totalorder %s27, 0
      %s30 = sadd.s32 %s29, 1
      %s31 = scalar_select %p28, %s29, %s30
      %p34 = pneg %p28
      %p35 = scmp.eq.s32.totalorder %s19, 1
      %p36 = por %p34, %p35
      %p37 = scmp.ne.s32.totalorder %s29, %s32
      %p38 = scmp.eq.s32.totalorder %s19, 0
      %p39 = por %p37, %p38
      %p40 = scmp.ne.s32.totalorder %s29, %s32
      %p41 = scmp.eq.s32.totalorder %s24, 1
      %p42 = por %p40, %p41
      %p43 = scmp.ne.s32.totalorder %s32, %s33
      %p44 = scmp.eq.s32.totalorder %s24, 0
      %p45 = por %p43, %p44
      %p46 = scmp.ne.s32.totalorder %s32, %s33
      %p47 = scmp.eq.s32.totalorder %s25, 1
      %p48 = por %p46, %p47
      %p50 = scmp.ne.s32.totalorder %s33, %s49
      %p51 = scmp.eq.s32.totalorder %s25, 0
      %p52 = por %p50, %p51
      %s54 = sadd.s32 %s53, 1
      %p57 = scmp.eq.s32.totalorder %s19, 1
      %p58 = scmp.ne.s32.totalorder %s53, %s55
      %p59 = scmp.eq.s32.totalorder %s19, 0
      %p60 = por %p58, %p59
      %p61 = scmp.ne.s32.totalorder %s53, %s55
      %p62 = scmp.eq.s32.totalorder %s24, 1
      %p63 = por %p61, %p62
      %p64 = scmp.ne.s32.totalorder %s55, %s56
      %p65 = scmp.eq.s32.totalorder %s24, 0
      %p66 = por %p64, %p65
      %p67 = scmp.ne.s32.totalorder %s55, %s56
      %p68 = scmp.eq.s32.totalorder %s25, 1
      %p69 = por %p67, %p68
      %p71 = scmp.ne.s32.totalorder %s56, %s70
      %p72 = scmp.eq.s32.totalorder %s25, 0
      %p73 = por %p71, %p72
      %s75 = sadd.s32 %s74, 1
      %p78 = scmp.eq.s32.totalorder %s19, 1
      %p79 = scmp.ne.s32.totalorder %s74, %s76
      %p80 = scmp.eq.s32.totalorder %s19, 0
      %p81 = por %p79, %p80
      %p82 = scmp.ne.s32.totalorder %s74, %s76
      %p83 = scmp.eq.s32.totalorder %s24, 1
      %p84 = por %p82, %p83
      %p85 = scmp.ne.s32.totalorder %s76, %s77
      %p86 = scmp.eq.s32.totalorder %s24, 0
      %p87 = por %p85, %p86
      %p88 = scmp.ne.s32.totalorder %s76, %s77
      %p89 = scmp.eq.s32.totalorder %s25, 1
      %p90 = por %p88, %p89
      %p92 = scmp.ne.s32.totalorder %s77, %s91
      %p93 = scmp.eq.s32.totalorder %s25, 0
      %p94 = por %p92, %p93
      %s96 = sadd.s32 %s95, 1
      %p99 = scmp.eq.s32.totalorder %s19, 1
      %p100 = scmp.ne.s32.totalorder %s95, %s97
      %p101 = scmp.eq.s32.totalorder %s19, 0
      %p102 = por %p100, %p101
      %p103 = scmp.ne.s32.totalorder %s95, %s97
      %p104 = scmp.eq.s32.totalorder %s24, 1
      %p105 = por %p103, %p104
      %p106 = scmp.ne.s32.totalorder %s97, %s98
      %p107 = scmp.eq.s32.totalorder %s24, 0
      %p108 = por %p106, %p107
      %p109 = scmp.ne.s32.totalorder %s97, %s98
      %p110 = scmp.eq.s32.totalorder %s25, 1
      %p111 = por %p109, %p110
      %p113 = scmp.ne.s32.totalorder %s98, %s112
      %p114 = scmp.eq.s32.totalorder %s25, 0
      %p115 = por %p113, %p114
      %s117 = sadd.s32 %s116, 1
      %p120 = scmp.eq.s32.totalorder %s19, 1
      %p121 = scmp.ne.s32.totalorder %s116, %s118
      %p122 = scmp.eq.s32.totalorder %s19, 0
      %p123 = por %p121, %p122
      %p124 = scmp.ne.s32.totalorder %s116, %s118
      %p125 = scmp.eq.s32.totalorder %s24, 1
      %p126 = por %p124, %p125
      %p127 = scmp.ne.s32.totalorder %s118, %s119
      %p128 = scmp.eq.s32.totalorder %s24, 0
      %p129 = por %p127, %p128
      %p130 = scmp.ne.s32.totalorder %s118, %s119
      %p131 = scmp.eq.s32.totalorder %s25, 1
      %p132 = por %p130, %p131
      %p134 = scmp.ne.s32.totalorder %s119, %s133
      %p135 = scmp.eq.s32.totalorder %s25, 0
      %p136 = por %p134, %p135
      %s138 = sadd.s32 %s137, 1
      %p141 = scmp.eq.s32.totalorder %s19, 1
      %p142 = scmp.ne.s32.totalorder %s137, %s139
      %p143 = scmp.eq.s32.totalorder %s19, 0
      %p144 = por %p142, %p143
      %p145 = scmp.ne.s32.totalorder %s137, %s139
      %p146 = scmp.eq.s32.totalorder %s24, 1
      %p147 = por %p145, %p146
      %p148 = scmp.ne.s32.totalorder %s139, %s140
      %p149 = scmp.eq.s32.totalorder %s24, 0
      %p150 = por %p148, %p149
      %p151 = scmp.ne.s32.totalorder %s139, %s140
      %p152 = scmp.eq.s32.totalorder %s25, 1
      %p153 = por %p151, %p152
      %p155 = scmp.ne.s32.totalorder %s140, %s154
      %p156 = scmp.eq.s32.totalorder %s25, 0
      %p157 = por %p155, %p156
      %s158 = ssub.s32 %s19, %s26
      %p159 = scmp.eq.s32.totalorder %s158, 0
      %s161 = sadd.s32 %s160, 1
      %s162 = scalar_select %p159, %s160, %s161
      %p165 = pneg %p159
      %p166 = scmp.eq.s32.totalorder %s19, 1
      %p167 = por %p165, %p166
      %p168 = scmp.ne.s32.totalorder %s160, %s163
      %p169 = scmp.eq.s32.totalorder %s19, 0
      %p170 = por %p168, %p169
      %p171 = scmp.ne.s32.totalorder %s160, %s163
      %p172 = scmp.eq.s32.totalorder %s24, 1
      %p173 = por %p171, %p172
      %p174 = scmp.ne.s32.totalorder %s163, %s164
      %p175 = scmp.eq.s32.totalorder %s24, 0
      %p176 = por %p174, %p175
      %p177 = scmp.ne.s32.totalorder %s163, %s164
      %p178 = scmp.eq.s32.totalorder %s25, 1
      %p179 = por %p177, %p178
      %p181 = scmp.ne.s32.totalorder %s164, %s180
      %p182 = scmp.eq.s32.totalorder %s25, 0
      %p183 = por %p181, %p182
      %p184 = scmp.le.s32.totalorder 1, %s19
      %p185 = scmp.lt.s32.totalorder %s19, 3
      %p186 = pnand %p184, %p185
      %p187 = pneg %p186
      // Predicated region
      $region9: #{tpu_custom_call.1} parent=5 // pred_check
        _
      $region10: #{tpu_custom_call.1} parent=5 // pred_check_branch
        %189 = sbr.rel (%p186) target = $region12
      $region11: #{tpu_custom_call.1} parent=5 // pred_region
        %s190 = ssub.s32 %s19, 1
        // Predicated region
        $region13: #{tpu_custom_call.1} parent=11 // pred_check
          %p191 = pneg %p66
        $region14: #{tpu_custom_call.1} parent=11 // pred_check_branch
          %193 = sbr.rel (%p191) target = $region16
        $region15: #{tpu_custom_call.1} parent=11 // pred_region
          _
        $region16: #{tpu_custom_call.1} parent=11 // pred_fallthru
          _
        // Predicated region
        $region17: #{tpu_custom_call.1} parent=11 // pred_check
          %p194 = pneg %p87
        $region18: #{tpu_custom_call.1} parent=11 // pred_check_branch
          %196 = sbr.rel (%p194) target = $region20
        $region19: #{tpu_custom_call.1} parent=11 // pred_region
          _
        $region20: #{tpu_custom_call.1} parent=11 // pred_fallthru
          _
        // Predicated region
        $region21: #{tpu_custom_call.1} parent=11 // pred_check
          %p197 = pneg %p108
        $region22: #{tpu_custom_call.1} parent=11 // pred_check_branch
          %199 = sbr.rel (%p197) target = $region24
        $region23: #{tpu_custom_call.1} parent=11 // pred_region
          %s201 = ssub.s32 4096, 4096
          %202 = vsyncadd [#allocation6], %s201
          %s203 = sshll.u32 [#allocation5], 4
          %s204 = int_to_ptr.vmem [resolvable:$true] %s203
          %209 = dma.hbm_to_vmem [thread:$0]  %s3, 4096, %s204, [#allocation6], 256, 256, 16
        $region24: #{tpu_custom_call.1} parent=11 // pred_fallthru
          _
        // Predicated region
        $region25: #{tpu_custom_call.1} parent=11 // pred_check
          %p210 = pneg %p129
        $region26: #{tpu_custom_call.1} parent=11 // pred_check_branch
          %212 = sbr.rel (%p210) target = $region28
        $region27: #{tpu_custom_call.1} parent=11 // pred_region
          _
        $region28: #{tpu_custom_call.1} parent=11 // pred_fallthru
          _
        // Predicated region
        $region29: #{tpu_custom_call.1} parent=11 // pred_check
          %p213 = pneg %p150
        $region30: #{tpu_custom_call.1} parent=11 // pred_check_branch
          %215 = sbr.rel (%p213) target = $region32
        $region31: #{tpu_custom_call.1} parent=11 // pred_region
          %s217 = ssub.s32 4096, 4096
          %218 = vsyncadd [#allocation6], %s217
          %s219 = sshll.u32 [#allocation7], 4
          %s220 = int_to_ptr.vmem [resolvable:$true] %s219
          %225 = dma.hbm_to_vmem [thread:$0]  %s5, 4096, %s220, [#allocation6], 128, 128, 8
        $region32: #{tpu_custom_call.1} parent=11 // pred_fallthru
          _
      $region12: #{tpu_custom_call.1} parent=5 // pred_fallthru
        _
      %p226 = scmp.lt.s32.totalorder %s19, 2
      // Predicated region
      $region33: #{tpu_custom_call.1} parent=5 // pred_check
        %p227 = pneg %p226
      $region34: #{tpu_custom_call.1} parent=5 // pred_check_branch
        %229 = sbr.rel (%p227) target = $region36
      $region35: #{tpu_custom_call.1} parent=5 // pred_region
        // Predicated region
        $region37: #{tpu_custom_call.1} parent=35 // pred_check
          %p230 = pneg %p39
        $region38: #{tpu_custom_call.1} parent=35 // pred_check_branch
          %232 = sbr.rel (%p230) target = $region40
        $region39: #{tpu_custom_call.1} parent=35 // pred_region
          %s233 = sand.u32 %s29, 1
          %s234 = scalar_lea.sflag [#allocation3], %s233
          %s235 = sand.u32 %s29, 1
          %s236 = smul.addr %s235, 8
          %s237 = scalar_lea.vmem [#allocation2], %s236
          %s239 = ssub.s32 128, 128
          %240 = vsyncadd %s234, %s239
          %s241 = smul.addr %s19, 128
          %s242 = scalar_lea.hbm %s0, %s241
          %s244 = sshll.u32 %s237, 4
          %s245 = int_to_ptr.vmem [resolvable:$true] %s244
          %247 = dma.hbm_to_vmem [thread:$0]  %s242, 128, %s245, %s234
        $region40: #{tpu_custom_call.1} parent=35 // pred_fallthru
          _
      $region36: #{tpu_custom_call.1} parent=5 // pred_fallthru
        _
      %p248 = scmp.le.s32.totalorder 1, %s19
      %p249 = scmp.lt.s32.totalorder %s19, 3
      %p250 = pnand %p248, %p249
      %p251 = pneg %p250
      // Predicated region
      $region41: #{tpu_custom_call.1} parent=5 // pred_check
        _
      $region42: #{tpu_custom_call.1} parent=5 // pred_check_branch
        %253 = sbr.rel (%p250) target = $region44
      $region43: #{tpu_custom_call.1} parent=5 // pred_region
        %s254 = ssub.s32 %s19, 1
        %s255 = sand.u32 %s32, 1
        %s256 = scalar_lea.sflag [#allocation3], %s255
        %s257 = sand.u32 %s32, 1
        %s258 = smul.addr %s257, 8
        %s259 = scalar_lea.vmem [#allocation2], %s258
        // Predicated region
        $region45: #{tpu_custom_call.1} parent=43 // pred_check
          %p260 = pneg %p45
        $region46: #{tpu_custom_call.1} parent=43 // pred_check_branch
          %262 = sbr.rel (%p260) target = $region48
        $region47: #{tpu_custom_call.1} parent=43 // pred_region
          %263 = dma.done %s256, 128
        $region48: #{tpu_custom_call.1} parent=43 // pred_fallthru
          _
        // Predicated region
        $region49: #{tpu_custom_call.1} parent=43 // pred_check
          %p264 = pneg %p108
        $region50: #{tpu_custom_call.1} parent=43 // pred_check_branch
          %266 = sbr.rel (%p264) target = $region52
        $region51: #{tpu_custom_call.1} parent=43 // pred_region
          %267 = dma.done [#allocation6], 4096
        $region52: #{tpu_custom_call.1} parent=43 // pred_fallthru
          _
        // Predicated region
        $region53: #{tpu_custom_call.1} parent=43 // pred_check
          %p268 = pneg %p150
        $region54: #{tpu_custom_call.1} parent=43 // pred_check_branch
          %270 = sbr.rel (%p268) target = $region56
        $region55: #{tpu_custom_call.1} parent=43 // pred_region
          %271 = dma.done [#allocation6], 4096
        $region56: #{tpu_custom_call.1} parent=43 // pred_fallthru
          _
        %s272 = sand.u32 %s32, 1
        %s273 = scalar_lea.sflag [#allocation3], %s272
        %s274 = sand.u32 %s32, 1
        %s275 = smul.addr %s274, 8
        %s276 = scalar_lea.vmem [#allocation2], %s275
        %p277 = pneg %p45
        %p278 = pneg %p42
        %p279 = pneg %p66
        %p280 = pneg %p63
        %p281 = pneg %p87
        %p282 = pneg %p84
        %p283 = pneg %p108
        %p284 = pneg %p105
        %p285 = pneg %p129
        %p286 = pneg %p126
        %p287 = pneg %p150
        %p288 = pneg %p147
        %p289 = pneg %p176
        %p290 = pneg %p173
        %s291 = sand.u32 %s163, 1
        %s292 = scalar_lea.sflag [#allocation4], %s291
        %s293 = sand.u32 %s163, 1
        %s294 = smul.addr %s293, 8
        %s295 = scalar_lea.vmem [#allocation8], %s294
        %v296 = vld [vmem:[%s259] sm:$0xff]
        %v297 = vld [vmem:[%s1] sm:$0x1]
        %v298 = vld [vmem:[%s2] sm:$0x1]
        %299 = vadd.xlane.f32.xlu0 %v296
        %v300 = vpop.xlane.xlu0 %299
        %v301 = vrcp.pop 128.0
        %v302 = vmul.f32 %v300, %v301
        %v303 = vsub.f32 %v296, %v302
        %v304 = vmul.f32 %v303, %v303
        %305 = vadd.xlane.f32.xlu0 %v304
        %v306 = vpop.xlane.xlu0 %305
        %v307 = vmul.f32 %v306, %v301
        %v308 = vadd.f32 %v307, 1e-05
        %v309 = vrsqrt.pop %v308
        %v310 = vmul.f32 %v303, %v309
        %v312 = vlaneseq
        %v313 = vshrl.u32 %v312, 7
        %v314 = vsub.s32 0, %v313
        %v315 = vrot.slane %v297, %v314
        %v317 = vmul.f32 %v310, %v315
        %v319 = vlaneseq
        %v320 = vshrl.u32 %v319, 7
        %v321 = vsub.s32 0, %v320
        %v322 = vrot.slane %v298, %v321
        %v324 = vadd.f32 %v317, %v322
        %v325 = vld [vmem:[#allocation5] sm:$0xff]
        %v326 = vld [vmem:[#allocation5 + $0x8] sm:$0xff]
        %v327 = vld [vmem:[#allocation5 + $0x10] sm:$0xff]
        %v328 = vld [vmem:[#allocation5 + $0x18] sm:$0xff]
        %v329 = vld [vmem:[#allocation5 + $0x20] sm:$0xff]
        %v330 = vld [vmem:[#allocation5 + $0x28] sm:$0xff]
        %v331 = vld [vmem:[#allocation5 + $0x30] sm:$0xff]
        %v332 = vld [vmem:[#allocation5 + $0x38] sm:$0xff]
        %v333 = vld [vmem:[#allocation5 + $0x40] sm:$0xff]
        %v334 = vld [vmem:[#allocation5 + $0x48] sm:$0xff]
        %v335 = vld [vmem:[#allocation5 + $0x50] sm:$0xff]
        %v336 = vld [vmem:[#allocation5 + $0x58] sm:$0xff]
        %v337 = vld [vmem:[#allocation5 + $0x60] sm:$0xff]
        %v338 = vld [vmem:[#allocation5 + $0x68] sm:$0xff]
        %v339 = vld [vmem:[#allocation5 + $0x70] sm:$0xff]
        %v340 = vld [vmem:[#allocation5 + $0x78] sm:$0xff]
        %v341 = vld [vmem:[#allocation5 + $0x80] sm:$0xff]
        %v342 = vld [vmem:[#allocation5 + $0x88] sm:$0xff]
        %v343 = vld [vmem:[#allocation5 + $0x90] sm:$0xff]
        %v344 = vld [vmem:[#allocation5 + $0x98] sm:$0xff]
        %v345 = vld [vmem:[#allocation5 + $0xa0] sm:$0xff]
        %v346 = vld [vmem:[#allocation5 + $0xa8] sm:$0xff]
        %v347 = vld [vmem:[#allocation5 + $0xb0] sm:$0xff]
        %v348 = vld [vmem:[#allocation5 + $0xb8] sm:$0xff]
        %v349 = vld [vmem:[#allocation5 + $0xc0] sm:$0xff]
        %v350 = vld [vmem:[#allocation5 + $0xc8] sm:$0xff]
        %v351 = vld [vmem:[#allocation5 + $0xd0] sm:$0xff]
        %v352 = vld [vmem:[#allocation5 + $0xd8] sm:$0xff]
        %v353 = vld [vmem:[#allocation5 + $0xe0] sm:$0xff]
        %v354 = vld [vmem:[#allocation5 + $0xe8] sm:$0xff]
        %v355 = vld [vmem:[#allocation5 + $0xf0] sm:$0xff]
        %v356 = vld [vmem:[#allocation5 + $0xf8] sm:$0xff]
        %v357 = vld [vmem:[%s4] sm:$0x3]
        %v359 = vlaneseq
        %v360 = vshrl.u32 %v359, 7
        %v361 = vsub.s32 0, %v360
        %v362 = vrot.slane %v357, %v361
        %v363 = vlaneseq
        %v364 = vshrl.u32 %v363, 7
        %v365 = vsub.s32 1, %v364
        %v366 = vrot.slane %v357, %v365
        %369 = vmatprep.subr.mxu0 %v326
        %370 = vmatpush1.msra.mxu0 %v325
        %371 = vmatprep.subr.mxu0 %v328
        %372 = vmatpush1.msra.mxu0 %v327
        %373 = vmatprep.subr.mxu0 %v330
        %374 = vmatpush1.msra.mxu0 %v329
        %375 = vmatprep.subr.mxu0 %v332
        %376 = vmatpush1.msra.mxu0 %v331
        %377 = vmatprep.subr.mxu0 %v334
        %378 = vmatpush1.msra.mxu0 %v333
        %379 = vmatprep.subr.mxu0 %v336
        %380 = vmatpush1.msra.mxu0 %v335
        %381 = vmatprep.subr.mxu0 %v338
        %382 = vmatpush1.msra.mxu0 %v337
        %383 = vmatprep.subr.mxu0 %v340
        %384 = vmatpush1.msra.mxu0 %v339
        %385 = vmatprep.subr.mxu0 %v342
        %386 = vmatpush1.msra.mxu0 %v341
        %387 = vmatprep.subr.mxu0 %v344
        %388 = vmatpush1.msra.mxu0 %v343
        %389 = vmatprep.subr.mxu0 %v346
        %390 = vmatpush1.msra.mxu0 %v345
        %391 = vmatprep.subr.mxu0 %v348
        %392 = vmatpush1.msra.mxu0 %v347
        %393 = vmatprep.subr.mxu0 %v350
        %394 = vmatpush1.msra.mxu0 %v349
        %395 = vmatprep.subr.mxu0 %v352
        %396 = vmatpush1.msra.mxu0 %v351
        %397 = vmatprep.subr.mxu0 %v354
        %398 = vmatpush1.msra.mxu0 %v353
        %399 = vmatprep.subr.mxu0 %v356
        %400 = vmatpush1.msra.mxu0 %v355
        %401 = vmatprep.subr.mxu0 0.0
        %402 = vmatpush1.msra.mxu0 0.0
        %403 = vmatprep.subr.mxu0 0.0
        %404 = vmatpush1.msra.mxu0 0.0
        %405 = vmatprep.subr.mxu0 0.0
        %406 = vmatpush1.msra.mxu0 0.0
        %407 = vmatprep.subr.mxu0 0.0
        %408 = vmatpush1.msra.mxu0 0.0
        %409 = vmatprep.subr.mxu0 0.0
        %410 = vmatpush1.msra.mxu0 0.0
        %411 = vmatprep.subr.mxu0 0.0
        %412 = vmatpush1.msra.mxu0 0.0
        %413 = vmatprep.subr.mxu0 0.0
        %414 = vmatpush1.msra.mxu0 0.0
        %415 = vmatprep.subr.mxu0 0.0
        %416 = vmatpush1.msra.mxu0 0.0
        %417 = vmatprep.subr.mxu0 0.0
        %418 = vmatpush1.msra.mxu0 0.0
        %419 = vmatprep.subr.mxu0 0.0
        %420 = vmatpush1.msra.mxu0 0.0
        %421 = vmatprep.subr.mxu0 0.0
        %422 = vmatpush1.msra.mxu0 0.0
        %423 = vmatprep.subr.mxu0 0.0
        %424 = vmatpush1.msra.mxu0 0.0
        %425 = vmatprep.subr.mxu0 0.0
        %426 = vmatpush1.msra.mxu0 0.0
        %427 = vmatprep.subr.mxu0 0.0
        %428 = vmatpush1.msra.mxu0 0.0
        %429 = vmatprep.subr.mxu0 0.0
        %430 = vmatpush1.msra.mxu0 0.0
        %431 = vmatprep.subr.mxu0 0.0
        %432 = vmatpush1.msra.mxu0 0.0
        %433 = vmatprep.mubr.f32.mxu0 0.0
        %434 = vmatmul.mubr.f32.gmra.mrb[0].mxu0 %v324
        %v435 = vpop.f32.mrb[0].mxu0
        %v436 = vadd.f32 %v362, %v435
        %v437 = vpop.f32.mrb[0].mxu0
        %v438 = vadd.f32 %v366, %v437
        %439 = vdwg.mxu0
        %v440 = vxor.u32 %v436, 2147483648
        %v441 = vxor.u32 %v438, 2147483648
        %v442 = vmul.f32 %v440, 1.442695
        %v443 = vpow.pop %v442
        %v444 = vmul.f32 %v441, 1.442695
        %v445 = vpow.pop %v444
        %v446 = vadd.f32 %v443, 1.0
        %v447 = vadd.f32 %v445, 1.0
        %v448 = vrcp.pop %v446
        %v449 = vmul.f32 1.0, %v448
        %v450 = vrcp.pop %v447
        %v451 = vmul.f32 1.0, %v450
        %v452 = vmul.f32 %v436, %v449
        %v453 = vmul.f32 %v438, %v451
        %v454 = vld [vmem:[#allocation7] sm:$0xff]
        %v455 = vld [vmem:[#allocation7 + $0x8] sm:$0xff]
        %v456 = vld [vmem:[#allocation7 + $0x10] sm:$0xff]
        %v457 = vld [vmem:[#allocation7 + $0x18] sm:$0xff]
        %v458 = vld [vmem:[#allocation7 + $0x20] sm:$0xff]
        %v459 = vld [vmem:[#allocation7 + $0x28] sm:$0xff]
        %v460 = vld [vmem:[#allocation7 + $0x30] sm:$0xff]
        %v461 = vld [vmem:[#allocation7 + $0x38] sm:$0xff]
        %v462 = vld [vmem:[#allocation7 + $0x40] sm:$0xff]
        %v463 = vld [vmem:[#allocation7 + $0x48] sm:$0xff]
        %v464 = vld [vmem:[#allocation7 + $0x50] sm:$0xff]
        %v465 = vld [vmem:[#allocation7 + $0x58] sm:$0xff]
        %v466 = vld [vmem:[#allocation7 + $0x60] sm:$0xff]
        %v467 = vld [vmem:[#allocation7 + $0x68] sm:$0xff]
        %v468 = vld [vmem:[#allocation7 + $0x70] sm:$0xff]
        %v469 = vld [vmem:[#allocation7 + $0x78] sm:$0xff]
        %v470 = vld [vmem:[#allocation7 + $0x80] sm:$0xff]
        %v471 = vld [vmem:[#allocation7 + $0x88] sm:$0xff]
        %v472 = vld [vmem:[#allocation7 + $0x90] sm:$0xff]
        %v473 = vld [vmem:[#allocation7 + $0x98] sm:$0xff]
        %v474 = vld [vmem:[#allocation7 + $0xa0] sm:$0xff]
        %v475 = vld [vmem:[#allocation7 + $0xa8] sm:$0xff]
        %v476 = vld [vmem:[#allocation7 + $0xb0] sm:$0xff]
        %v477 = vld [vmem:[#allocation7 + $0xb8] sm:$0xff]
        %v478 = vld [vmem:[#allocation7 + $0xc0] sm:$0xff]
        %v479 = vld [vmem:[#allocation7 + $0xc8] sm:$0xff]
        %v480 = vld [vmem:[#allocation7 + $0xd0] sm:$0xff]
        %v481 = vld [vmem:[#allocation7 + $0xd8] sm:$0xff]
        %v482 = vld [vmem:[#allocation7 + $0xe0] sm:$0xff]
        %v483 = vld [vmem:[#allocation7 + $0xe8] sm:$0xff]
        %v484 = vld [vmem:[#allocation7 + $0xf0] sm:$0xff]
        %v485 = vld [vmem:[#allocation7 + $0xf8] sm:$0xff]
        %486 = vmatprep.subr.mxu0 0.0
        %487 = vmatpush1.msra.mxu0 %v454
        %488 = vmatprep.subr.mxu0 0.0
        %489 = vmatpush1.msra.mxu0 %v455
        %490 = vmatprep.subr.mxu0 0.0
        %491 = vmatpush1.msra.mxu0 %v456
        %492 = vmatprep.subr.mxu0 0.0
        %493 = vmatpush1.msra.mxu0 %v457
        %494 = vmatprep.subr.mxu0 0.0
        %495 = vmatpush1.msra.mxu0 %v458
        %496 = vmatprep.subr.mxu0 0.0
        %497 = vmatpush1.msra.mxu0 %v459
        %498 = vmatprep.subr.mxu0 0.0
        %499 = vmatpush1.msra.mxu0 %v460
        %500 = vmatprep.subr.mxu0 0.0
        %501 = vmatpush1.msra.mxu0 %v461
        %502 = vmatprep.subr.mxu0 0.0
        %503 = vmatpush1.msra.mxu0 %v462
        %504 = vmatprep.subr.mxu0 0.0
        %505 = vmatpush1.msra.mxu0 %v463
        %506 = vmatprep.subr.mxu0 0.0
        %507 = vmatpush1.msra.mxu0 %v464
        %508 = vmatprep.subr.mxu0 0.0
        %509 = vmatpush1.msra.mxu0 %v465
        %510 = vmatprep.subr.mxu0 0.0
        %511 = vmatpush1.msra.mxu0 %v466
        %512 = vmatprep.subr.mxu0 0.0
        %513 = vmatpush1.msra.mxu0 %v467
        %514 = vmatprep.subr.mxu0 0.0
        %515 = vmatpush1.msra.mxu0 %v468
        %516 = vmatprep.subr.mxu0 0.0
        %517 = vmatpush1.msra.mxu0 %v469
        %518 = vmatprep.subr.mxu0 0.0
        %519 = vmatpush1.msra.mxu0 %v470
        %520 = vmatprep.subr.mxu0 0.0
        %521 = vmatpush1.msra.mxu0 %v471
        %522 = vmatprep.subr.mxu0 0.0
        %523 = vmatpush1.msra.mxu0 %v472
        %524 = vmatprep.subr.mxu0 0.0
        %525 = vmatpush1.msra.mxu0 %v473
        %526 = vmatprep.subr.mxu0 0.0
        %527 = vmatpush1.msra.mxu0 %v474
        %528 = vmatprep.subr.mxu0 0.0
        %529 = vmatpush1.msra.mxu0 %v475
        %530 = vmatprep.subr.mxu0 0.0
        %531 = vmatpush1.msra.mxu0 %v476
        %532 = vmatprep.subr.mxu0 0.0
        %533 = vmatpush1.msra.mxu0 %v477
        %534 = vmatprep.subr.mxu0 0.0
        %535 = vmatpush1.msra.mxu0 %v478
        %536 = vmatprep.subr.mxu0 0.0
        %537 = vmatpush1.msra.mxu0 %v479
        %538 = vmatprep.subr.mxu0 0.0
        %539 = vmatpush1.msra.mxu0 %v480
        %540 = vmatprep.subr.mxu0 0.0
        %541 = vmatpush1.msra.mxu0 %v481
        %542 = vmatprep.subr.mxu0 0.0
        %543 = vmatpush1.msra.mxu0 %v482
        %544 = vmatprep.subr.mxu0 0.0
        %545 = vmatpush1.msra.mxu0 %v483
        %546 = vmatprep.subr.mxu0 0.0
        %547 = vmatpush1.msra.mxu0 %v484
        %548 = vmatprep.subr.mxu0 0.0
        %549 = vmatpush1.msra.mxu0 %v485
        %550 = vmatprep.mubr.f32.mxu0 %v453
        %551 = vmatmul.mubr.f32.gmra.mrb[0].mxu0 %v452
        %v552 = vpop.f32.mrb[0].mxu0
        %v553 = vadd.f32 %v296, %v552
        %v554 = vpop.f32.mrb[0].mxu0
        %555 = vdwg.mxu0
        %556 = vst [vmem:[%s295] sm:$0xff] %v553
        %s557 = sand.u32 %s163, 1
        %s558 = scalar_lea.sflag [#allocation4], %s557
        %s559 = sand.u32 %s163, 1
        %s560 = smul.addr %s559, 8
        %s561 = scalar_lea.vmem [#allocation8], %s560
        // Predicated region
        $region57: #{tpu_custom_call.1} parent=43 // pred_check
          %p562 = pneg %p173
        $region58: #{tpu_custom_call.1} parent=43 // pred_check_branch
          %564 = sbr.rel (%p562) target = $region60
        $region59: #{tpu_custom_call.1} parent=43 // pred_region
          %s566 = ssub.s32 128, 128
          %567 = vsyncadd %s558, %s566
          %s568 = smul.addr %s24, 128
          %s569 = scalar_lea.hbm %s6, %s568
          %s571 = sshll.u32 %s561, 4
          %s572 = int_to_ptr.vmem [resolvable:$true] %s571
          %574 = dma.vmem_to_hbm [thread:$0]  %s572, 128, %s569, %s558
        $region60: #{tpu_custom_call.1} parent=43 // pred_fallthru
          _
      $region44: #{tpu_custom_call.1} parent=5 // pred_fallthru
        _
      %p575 = scmp.le.s32.totalorder 2, %s19
      // Predicated region
      $region61: #{tpu_custom_call.1} parent=5 // pred_check
        %p576 = pneg %p575
      $region62: #{tpu_custom_call.1} parent=5 // pred_check_branch
        %578 = sbr.rel (%p576) target = $region64
      $region63: #{tpu_custom_call.1} parent=5 // pred_region
        %s579 = ssub.s32 %s19, 2
        // Predicated region
        $region65: #{tpu_custom_call.1} parent=63 // pred_check
          %p580 = pneg %p179
        $region66: #{tpu_custom_call.1} parent=63 // pred_check_branch
          %582 = sbr.rel (%p580) target = $region68
        $region67: #{tpu_custom_call.1} parent=63 // pred_region
          %s583 = sand.u32 %s164, 1
          %s584 = scalar_lea.sflag [#allocation4], %s583
          %s585 = sand.u32 %s164, 1
          %s586 = smul.addr %s585, 8
          %s587 = scalar_lea.vmem [#allocation8], %s586
          %588 = dma.done %s584, 128
        $region68: #{tpu_custom_call.1} parent=63 // pred_fallthru
          _
      $region64: #{tpu_custom_call.1} parent=5 // pred_fallthru
        _
    $region6: #{tpu_custom_call.1} parent=1 // loop_footer
      %s23 = sadd.s32 1, %s19
    $region7: #{tpu_custom_call.1} parent=1 // loop_footer_branch
      %18 = sbr.rel target = $region3
    $region8: #{tpu_custom_call.1} parent=1 // loop_exit
      _
    %589 = vsyncpa [#allocation3], 1
    %s590 = scalar_lea.sflag [#allocation3], 1
    %591 = vsyncpa %s590, 1
    %592 = vsyncpa [#allocation6], 1
    %593 = vsyncpa [#allocation4], 1
    %s594 = scalar_lea.sflag [#allocation4], 1
    %595 = vsyncpa %s594, 1

</llo_original>
